<compile_context>
chip_gen: v7x
topology: tpu7x:2x2x1
jax: 0.10.0
libtpu: 0.0.40
codegen_flags: <defaults>
</compile_context>

<pallas_src>
import functools

import jax
import jax.numpy as jnp
import numpy as np
from jax.experimental import pallas as pl
from jax.experimental.pallas import tpu as pltpu

LN_EPS = 1e-5  # torch.nn.LayerNorm default


def _round_up(x, m):
    return ((x + m - 1) // m) * m


def residual_kernel(x_ref, w_ref, b_ref, gamma_ref, beta_ref, o_ref):
    # x_ref: (TM, D) tile of rows (native dtype); w_ref: (D, D) native dtype;
    # b/gamma/beta: (1, D) f32.
    x = x_ref[...]                                        # keep native dtype for the MXU

    # --- sublayer: Linear(dim, dim) on the MXU, f32 accumulation ---
    y = jnp.dot(x, w_ref[...], preferred_element_type=jnp.float32)
    y = y + b_ref[...]                                    # f32 bias, no cast needed

    # --- dropout (eval mode => identity) + residual add, in f32 ---
    z = x.astype(jnp.float32) + y

    # --- LayerNorm over last dim (biased variance, torch default) ---
    # sum / sum-of-squares form: the two XLU reductions are independent.
    d_inv = jnp.float32(1.0 / z.shape[-1])
    s1 = jnp.sum(z, axis=-1, keepdims=True)
    s2 = jnp.sum(z * z, axis=-1, keepdims=True)
    mean = s1 * d_inv
    var = s2 * d_inv - mean * mean
    inv = jax.lax.rsqrt(var + LN_EPS)
    out = (z - mean) * inv * gamma_ref[...] + beta_ref[...]

    o_ref[...] = out.astype(o_ref.dtype)


@functools.partial(jax.jit, static_argnames=("tm",))
def residual_forward(x, w_t, b, gamma, beta, *, tm=2048):
    """x: (B, S, D); w_t: (D, D) already transposed (in, out); b/gamma/beta: (D,).

    Output dtype == x.dtype.  Pass x / w_t in bf16 for the half-HBM-traffic path.
    """
    B, S, D = x.shape
    rows = B * S
    x2 = x.reshape(rows, D)
    # Broadcast vectors go in as f32 so the kernel does no per-step casts.
    b2 = b.reshape(1, D).astype(jnp.float32)
    g2 = gamma.reshape(1, D).astype(jnp.float32)
    bt2 = beta.reshape(1, D).astype(jnp.float32)

    itemsize = jnp.dtype(x.dtype).itemsize
    w_itemsize = jnp.dtype(w_t.dtype).itemsize

    # --- derive the row tile from a VMEM tile budget (memory-bound kernel) ---
    SUBLANE = 16                               # covers packed bf16 sublane tiling too
    tile_budget = 12 * (1 << 20)               # bytes for double-buffered x + out tiles
    bytes_per_row = 4 * D * itemsize           # (x + out) * double buffer
    tm_cap = max(SUBLANE, tile_budget // bytes_per_row)
    tm_req = max(SUBLANE, int(min(tm, tm_cap)))

    # Balanced tiles: never pad the tail up to a full tm.
    num_tiles = -(-rows // tm_req)             # cdiv
    tm_eff = _round_up(-(-rows // num_tiles), SUBLANE)
    rows_p = tm_eff * num_tiles
    if rows_p != rows:
        x2 = jnp.pad(x2, ((0, rows_p - rows), (0, 0)))

    # VMEM estimate: double-buffered x/out tiles + (double-buffered) weight +
    # broadcast vectors, with headroom; capped for v7x's 64 MiB per-TC VMEM.
    vmem_need = (2 * D * D * w_itemsize
                 + 2 * tm_eff * D * itemsize        # x tiles
                 + 2 * tm_eff * D * itemsize        # out tiles
                 + 6 * D * 4)                       # b / gamma / beta
    vmem_limit = int(min(max(3 * vmem_need // 2, 32 * (1 << 20)), 48 * (1 << 20)))

    cost = pl.CostEstimate(
        flops=2 * rows_p * D * D + 10 * rows_p * D,
        transcendentals=rows_p,                     # one rsqrt per row
        bytes_accessed=(2 * rows_p * D * itemsize + D * D * w_itemsize + 3 * D * 4),
    )

    out = pl.pallas_call(
        residual_kernel,
        out_shape=jax.ShapeDtypeStruct((rows_p, D), x.dtype),
        grid_spec=pltpu.PrefetchScalarGridSpec(
            num_scalar_prefetch=0,
            grid=(num_tiles,),
            in_specs=[
                pl.BlockSpec((tm_eff, D), lambda i: (i, 0)),   # x rows tile
                pl.BlockSpec((D, D), lambda i: (0, 0)),        # weight (constant block)
                pl.BlockSpec((1, D), lambda i: (0, 0)),        # bias
                pl.BlockSpec((1, D), lambda i: (0, 0)),        # gamma
                pl.BlockSpec((1, D), lambda i: (0, 0)),        # beta
            ],
            out_specs=pl.BlockSpec((tm_eff, D), lambda i: (i, 0)),
        ),
        compiler_params=pltpu.CompilerParams(
            # TODO(synk): on v7x use CORE_PARALLEL (or pl.core_map over a
            # tensorcore mesh) on this axis to engage both TensorCores.
            dimension_semantics=("parallel",),
            vmem_limit_bytes=vmem_limit,
        ),
        cost_estimate=cost,
    )(x2, w_t, b2, g2, bt2)

    if rows_p != rows:
        out = out[:rows]
    return out.reshape(B, S, D)


def reference_forward(x, w_t, b, gamma, beta):
    """Pure-JAX reference of the same math (eval-mode dropout)."""
    y = jnp.einsum("bsd,de->bse", x, w_t) + b
    z = x + y
    mean = jnp.mean(z, axis=-1, keepdims=True)
    var = jnp.mean((z - mean) ** 2, axis=-1, keepdims=True)
    return (z - mean) * jax.lax.rsqrt(var + LN_EPS) * gamma + beta


if __name__ == "__main__":
    # Small but lane-dense test shape: batch=2, seq=8, hidden=128.
    B, S, D = 2, 8, 128

    key = jax.random.PRNGKey(0)
    kx, kw, kb, kg, kbeta = jax.random.split(key, 5)

    x = jax.random.normal(kx, (B, S, D), dtype=jnp.float32)

    # Deterministic parameter init (mimics nn.Linear uniform(-1/sqrt(D), 1/sqrt(D)))
    bound = 1.0 / np.sqrt(D)
    w = jax.random.uniform(kw, (D, D), minval=-bound, maxval=bound,
                           dtype=jnp.float32)          # (out, in)
    w_t = w.T                                          # pass transposed: (in, out)
    b = jax.random.uniform(kb, (D,), minval=-bound, maxval=bound, dtype=jnp.float32)
    # nn.LayerNorm defaults are ones/zeros; perturb deterministically to be nontrivial
    gamma = 1.0 + 0.01 * jax.random.normal(kg, (D,), dtype=jnp.float32)
    beta = 0.01 * jax.random.normal(kbeta, (D,), dtype=jnp.float32)

    # --- f32 I/O path (module default dtype) ---
    out = jax.block_until_ready(residual_forward(x, w_t, b, gamma, beta))
    ref = reference_forward(x, w_t, b, gamma, beta)
    # Tolerance covers MXU pass-count ambiguity for f32 matmuls (Mosaic vs XLA
    # may pick different bf16-pass decompositions for f32 operands).
    np.testing.assert_allclose(np.asarray(out), np.asarray(ref), rtol=2e-2, atol=2e-2)

    # --- bf16 I/O path (halves HBM traffic; recommended on v5e/v6e/v7x) ---
    xb = x.astype(jnp.bfloat16)
    wb = w_t.astype(jnp.bfloat16)
    out_bf = jax.block_until_ready(residual_forward(xb, wb, b, gamma, beta))
    ref_bf = reference_forward(xb.astype(jnp.float32), wb.astype(jnp.float32),
                               b, gamma, beta)
    np.testing.assert_allclose(np.asarray(out_bf.astype(jnp.float32)),
                               np.asarray(ref_bf), rtol=5e-2, atol=5e-2)

    print("KERNEL_OK")
</pallas_src>

<mosaic_0001>
module attributes {stable_mosaic.version = 11 : i64} {
  func.func @residual_kernel(%arg0: i32, %arg1: memref<16x128xf32, #tpu.memory_space<vmem>>, %arg2: memref<128x128xf32, #tpu.memory_space<vmem>>, %arg3: memref<1x128xf32, #tpu.memory_space<vmem>>, %arg4: memref<1x128xf32, #tpu.memory_space<vmem>>, %arg5: memref<1x128xf32, #tpu.memory_space<vmem>>, %arg6: memref<16x128xf32, #tpu.memory_space<vmem>>) attributes {dimension_semantics = [#tpu.dimension_semantics<parallel>], iteration_bounds = array<i64: 1>, scalar_prefetch = 0 : i64, scratch_operands = 0 : i64, tpu.core_type = #tpu.core_type<tc>, window_params = [{transform_indices = @transform_0, window_bounds = array<i64: 16, 128>}, {pipeline_mode = #tpu.pipeline_mode<synchronous>, transform_indices = @transform_1, window_bounds = array<i64: 128, 128>}, {pipeline_mode = #tpu.pipeline_mode<synchronous>, transform_indices = @transform_2, window_bounds = array<i64: 1, 128>}, {pipeline_mode = #tpu.pipeline_mode<synchronous>, transform_indices = @transform_3, window_bounds = array<i64: 1, 128>}, {pipeline_mode = #tpu.pipeline_mode<synchronous>, transform_indices = @transform_4, window_bounds = array<i64: 1, 128>}, {transform_indices = @transform_5, window_bounds = array<i64: 16, 128>}]} {
    %c0 = arith.constant 0 : index
    %c0_0 = arith.constant 0 : index
    %0 = vector.load %arg1[%c0, %c0_0] : memref<16x128xf32, #tpu.memory_space<vmem>>, vector<16x128xf32>
    %c0_1 = arith.constant 0 : index
    %c0_2 = arith.constant 0 : index
    %1 = vector.load %arg2[%c0_1, %c0_2] : memref<128x128xf32, #tpu.memory_space<vmem>>, vector<128x128xf32>
    %cst = arith.constant dense<0.000000e+00> : vector<16x128xf32>
    %2 = tpu.matmul %0, %1, %cst {dimension_numbers = #tpu.dot_dimension_numbers<[1], [0], [0], [1], [0, 0, 1, 1], [], []>} : vector<16x128xf32>, vector<128x128xf32>, vector<16x128xf32> -> vector<16x128xf32>
    %c0_3 = arith.constant 0 : index
    %c0_4 = arith.constant 0 : index
    %3 = vector.load %arg3[%c0_3, %c0_4] : memref<1x128xf32, #tpu.memory_space<vmem>>, vector<1x128xf32>
    %4 = vector.broadcast %3 : vector<1x128xf32> to vector<16x128xf32>
    %5 = arith.addf %2, %4 : vector<16x128xf32>
    %6 = arith.addf %0, %5 : vector<16x128xf32>
    %cst_5 = arith.constant dense<0.000000e+00> : vector<16xf32>
    %7 = vector.multi_reduction <add>, %6, %cst_5 [1] : vector<16x128xf32> to vector<16xf32>
    %8 = vector.shape_cast %7 : vector<16xf32> to vector<16x1xf32>
    %9 = arith.mulf %6, %6 : vector<16x128xf32>
    %cst_6 = arith.constant dense<0.000000e+00> : vector<16xf32>
    %10 = vector.multi_reduction <add>, %9, %cst_6 [1] : vector<16x128xf32> to vector<16xf32>
    %11 = vector.shape_cast %10 : vector<16xf32> to vector<16x1xf32>
    %cst_7 = arith.constant 7.812500e-03 : f32
    %12 = vector.broadcast %cst_7 : f32 to vector<16x1xf32>
    %13 = arith.mulf %8, %12 : vector<16x1xf32>
    %cst_8 = arith.constant 7.812500e-03 : f32
    %14 = vector.broadcast %cst_8 : f32 to vector<16x1xf32>
    %15 = arith.mulf %11, %14 : vector<16x1xf32>
    %16 = arith.mulf %13, %13 : vector<16x1xf32>
    %17 = arith.subf %15, %16 : vector<16x1xf32>
    %cst_9 = arith.constant 9.99999974E-6 : f32
    %18 = vector.broadcast %cst_9 : f32 to vector<16x1xf32>
    %19 = arith.addf %17, %18 : vector<16x1xf32>
    %20 = math.rsqrt %19 : vector<16x1xf32>
    %21 = vector.broadcast %13 : vector<16x1xf32> to vector<16x128xf32>
    %22 = arith.subf %6, %21 : vector<16x128xf32>
    %23 = vector.broadcast %20 : vector<16x1xf32> to vector<16x128xf32>
    %24 = arith.mulf %22, %23 : vector<16x128xf32>
    %c0_10 = arith.constant 0 : index
    %c0_11 = arith.constant 0 : index
    %25 = vector.load %arg4[%c0_10, %c0_11] : memref<1x128xf32, #tpu.memory_space<vmem>>, vector<1x128xf32>
    %26 = vector.broadcast %25 : vector<1x128xf32> to vector<16x128xf32>
    %27 = arith.mulf %24, %26 : vector<16x128xf32>
    %c0_12 = arith.constant 0 : index
    %c0_13 = arith.constant 0 : index
    %28 = vector.load %arg5[%c0_12, %c0_13] : memref<1x128xf32, #tpu.memory_space<vmem>>, vector<1x128xf32>
    %29 = vector.broadcast %28 : vector<1x128xf32> to vector<16x128xf32>
    %30 = arith.addf %27, %29 : vector<16x128xf32>
    %c0_14 = arith.constant 0 : index
    %c0_15 = arith.constant 0 : index
    %31 = vector.load %arg6[%c0_14, %c0_15] : memref<16x128xf32, #tpu.memory_space<vmem>>, vector<16x128xf32>
    tpu.vector_store %arg6[%c0_14, %c0_15], %30 {strides = array<i32>} : memref<16x128xf32, #tpu.memory_space<vmem>>, vector<16x128xf32>,
    return
  }
  func.func @transform_0(%arg0: i32) -> (i32, i32) {
    %c0_i32 = arith.constant 0 : i32
    %c0_i32_0 = arith.constant 0 : i32
    return %arg0, %c0_i32 : i32, i32
  }
  func.func @transform_1(%arg0: i32) -> (i32, i32) {
    %c0_i32 = arith.constant 0 : i32
    %c0_i32_0 = arith.constant 0 : i32
    %c0_i32_1 = arith.constant 0 : i32
    return %c0_i32, %c0_i32_0 : i32, i32
  }
  func.func @transform_2(%arg0: i32) -> (i32, i32) {
    %c0_i32 = arith.constant 0 : i32
    %c0_i32_0 = arith.constant 0 : i32
    %c0_i32_1 = arith.constant 0 : i32
    return %c0_i32, %c0_i32_0 : i32, i32
  }
  func.func @transform_3(%arg0: i32) -> (i32, i32) {
    %c0_i32 = arith.constant 0 : i32
    %c0_i32_0 = arith.constant 0 : i32
    %c0_i32_1 = arith.constant 0 : i32
    return %c0_i32, %c0_i32_0 : i32, i32
  }
  func.func @transform_4(%arg0: i32) -> (i32, i32) {
    %c0_i32 = arith.constant 0 : i32
    %c0_i32_0 = arith.constant 0 : i32
    %c0_i32_1 = arith.constant 0 : i32
    return %c0_i32, %c0_i32_0 : i32, i32
  }
  func.func @transform_5(%arg0: i32) -> (i32, i32) {
    %c0_i32 = arith.constant 0 : i32
    %c0_i32_0 = arith.constant 0 : i32
    return %arg0, %c0_i32 : i32, i32
  }
}

</mosaic_0001>

<llo_original>
// kernel: residual_forward.1
$region0: #{residual_forward.1}
  #allocation0 [shape = 'u32[]', space=smem, size = 0x4, offset = 0x4, fixed_abs, tag = 'smem constant byte address 0x4 - core index']
  #allocation1 [shape = 'u32[144,128]{1,0:T(1,128)}', space=vmem, size = 0x12000, scoped, tag = 'internal scratch']
  %s0 = inlined_call_operand.hbm [shape: f32[16,128], index: 0, kind: input, shape index: {}]
  %s1 = inlined_call_operand.hbm [shape: f32[128,128], index: 1, kind: input, shape index: {}]
  %s2 = inlined_call_operand.vmem [shape: f32[1,128], index: 2, kind: input, shape index: {}]
  %s3 = inlined_call_operand.vmem [shape: f32[1,128], index: 3, kind: input, shape index: {}]
  %s4 = inlined_call_operand.vmem [shape: f32[1,128], index: 4, kind: input, shape index: {}]
  %s5 = inlined_call_operand.hbm [shape: f32[16,128], index: 5, kind: output, shape index: {}]
  %s6 = sld [smem:[#allocation0]]
  $region38: #{residual_forward.1} parent=0
    _
  %s8 = ssub.s32 1, %s6
  %s9 = scalar_select 0, %s8, %s6
  $region1: #{residual_forward.1} parent=0
    #allocation2 [shape = 'u8[8192]{0}', space=vmem, size = 0x2000, scoped, tag = 'input window, operand 0, single buffered']
    #allocation3 [shape = 's32[1]{0}', space=sflag, size = 0x4, scoped, tag = 'scoped memory for residual_forward.1']
    #allocation4 [shape = 's32[1]{0}', space=sflag, size = 0x4, scoped, tag = 'scoped memory for residual_forward.1']
    #allocation5 [shape = 'u8[65536]{0}', space=vmem, size = 0x10000, scoped, tag = 'input window, operand 1, single buffered']
    #allocation6 [shape = 's32[1]{0}', space=sflag, size = 0x4, scoped, tag = 'scoped memory for residual_forward.1']
    #allocation7 [shape = 'u8[8192]{0}', space=vmem, size = 0x2000, scoped, tag = 'output window, operand 0, single buffered']
    %10 = vsyncpa [#allocation3], 0
    %11 = vsyncpa [#allocation6], 0
    %12 = vsyncpa [#allocation4], 0
    // Predicated region
    $region2: #{residual_forward.1} parent=1 // pred_check
      _
    $region3: #{residual_forward.1} parent=1 // pred_check_branch
      %14 = sbr.rel (0) target = $region5
    $region4: #{residual_forward.1} parent=1 // pred_region
      %s16 = ssub.s32 256, 256
      %17 = vsyncadd [#allocation3], %s16
      %s18 = sshll.u32 [#allocation2], 4
      %s19 = int_to_ptr.vmem [resolvable:$true] %s18
      %24 = dma.hbm_to_vmem [thread:$0]  %s0, 256, %s19, [#allocation3], 128, 128, 8
    $region5: #{residual_forward.1} parent=1 // pred_fallthru
      _
    // Predicated region
    $region6: #{residual_forward.1} parent=1 // pred_check
      _
    $region7: #{residual_forward.1} parent=1 // pred_check_branch
      %26 = sbr.rel (0) target = $region9
    $region8: #{residual_forward.1} parent=1 // pred_region
      %s28 = ssub.s32 2048, 2048
      %29 = vsyncadd [#allocation6], %s28
      %s30 = sshll.u32 [#allocation5], 4
      %s31 = int_to_ptr.vmem [resolvable:$true] %s30
      %36 = dma.hbm_to_vmem [thread:$0]  %s1, 2048, %s31, [#allocation6], 128, 128, 8
    $region9: #{residual_forward.1} parent=1 // pred_fallthru
      _
    // Predicated region
    $region10: #{residual_forward.1} parent=1 // pred_check
      _
    $region11: #{residual_forward.1} parent=1 // pred_check_branch
      %38 = sbr.rel (0) target = $region13
    $region12: #{residual_forward.1} parent=1 // pred_region
      _
    $region13: #{residual_forward.1} parent=1 // pred_fallthru
      _
    // Predicated region
    $region14: #{residual_forward.1} parent=1 // pred_check
      _
    $region15: #{residual_forward.1} parent=1 // pred_check_branch
      %40 = sbr.rel (0) target = $region17
    $region16: #{residual_forward.1} parent=1 // pred_region
      _
    $region17: #{residual_forward.1} parent=1 // pred_fallthru
      _
    // Predicated region
    $region18: #{residual_forward.1} parent=1 // pred_check
      _
    $region19: #{residual_forward.1} parent=1 // pred_check_branch
      %42 = sbr.rel (0) target = $region21
    $region20: #{residual_forward.1} parent=1 // pred_region
      _
    $region21: #{residual_forward.1} parent=1 // pred_fallthru
      _
    // Predicated region
    $region22: #{residual_forward.1} parent=1 // pred_check
      _
    $region23: #{residual_forward.1} parent=1 // pred_check_branch
      %44 = sbr.rel (0) target = $region25
    $region24: #{residual_forward.1} parent=1 // pred_region
      %45 = dma.done [#allocation3], 256
    $region25: #{residual_forward.1} parent=1 // pred_fallthru
      _
    // Predicated region
    $region26: #{residual_forward.1} parent=1 // pred_check
      _
    $region27: #{residual_forward.1} parent=1 // pred_check_branch
      %47 = sbr.rel (0) target = $region29
    $region28: #{residual_forward.1} parent=1 // pred_region
      %48 = dma.done [#allocation6], 2048
    $region29: #{residual_forward.1} parent=1 // pred_fallthru
      _
    %v49 = vld [vmem:[#allocation2] sm:$0xff]
    %v50 = vld [vmem:[#allocation2 + $0x8] sm:$0xff]
    %v51 = vld [vmem:[#allocation5] sm:$0xff]
    %v52 = vld [vmem:[#allocation5 + $0x8] sm:$0xff]
    %v53 = vld [vmem:[#allocation5 + $0x10] sm:$0xff]
    %v54 = vld [vmem:[#allocation5 + $0x18] sm:$0xff]
    %v55 = vld [vmem:[#allocation5 + $0x20] sm:$0xff]
    %v56 = vld [vmem:[#allocation5 + $0x28] sm:$0xff]
    %v57 = vld [vmem:[#allocation5 + $0x30] sm:$0xff]
    %v58 = vld [vmem:[#allocation5 + $0x38] sm:$0xff]
    %v59 = vld [vmem:[#allocation5 + $0x40] sm:$0xff]
    %v60 = vld [vmem:[#allocation5 + $0x48] sm:$0xff]
    %v61 = vld [vmem:[#allocation5 + $0x50] sm:$0xff]
    %v62 = vld [vmem:[#allocation5 + $0x58] sm:$0xff]
    %v63 = vld [vmem:[#allocation5 + $0x60] sm:$0xff]
    %v64 = vld [vmem:[#allocation5 + $0x68] sm:$0xff]
    %v65 = vld [vmem:[#allocation5 + $0x70] sm:$0xff]
    %v66 = vld [vmem:[#allocation5 + $0x78] sm:$0xff]
    %v67 = vld [vmem:[%s2] sm:$0x1]
    %v69 = vlaneseq
    %v70 = vshrl.u32 %v69, 7
    %v71 = vsub.s32 0, %v70
    %v72 = vrot.slane %v67, %v71
    %74 = vmatprep.subr.mxu0 0.0
    %75 = vmatpush1.msra.mxu0 %v51
    %76 = vmatprep.subr.mxu0 0.0
    %77 = vmatpush1.msra.mxu0 %v52
    %78 = vmatprep.subr.mxu0 0.0
    %79 = vmatpush1.msra.mxu0 %v53
    %80 = vmatprep.subr.mxu0 0.0
    %81 = vmatpush1.msra.mxu0 %v54
    %82 = vmatprep.subr.mxu0 0.0
    %83 = vmatpush1.msra.mxu0 %v55
    %84 = vmatprep.subr.mxu0 0.0
    %85 = vmatpush1.msra.mxu0 %v56
    %86 = vmatprep.subr.mxu0 0.0
    %87 = vmatpush1.msra.mxu0 %v57
    %88 = vmatprep.subr.mxu0 0.0
    %89 = vmatpush1.msra.mxu0 %v58
    %90 = vmatprep.subr.mxu0 0.0
    %91 = vmatpush1.msra.mxu0 %v59
    %92 = vmatprep.subr.mxu0 0.0
    %93 = vmatpush1.msra.mxu0 %v60
    %94 = vmatprep.subr.mxu0 0.0
    %95 = vmatpush1.msra.mxu0 %v61
    %96 = vmatprep.subr.mxu0 0.0
    %97 = vmatpush1.msra.mxu0 %v62
    %98 = vmatprep.subr.mxu0 0.0
    %99 = vmatpush1.msra.mxu0 %v63
    %100 = vmatprep.subr.mxu0 0.0
    %101 = vmatpush1.msra.mxu0 %v64
    %102 = vmatprep.subr.mxu0 0.0
    %103 = vmatpush1.msra.mxu0 %v65
    %104 = vmatprep.subr.mxu0 0.0
    %105 = vmatpush1.msra.mxu0 %v66
    %106 = vmatprep.subr.mxu0 0.0
    %107 = vmatpush1.msra.mxu0 0.0
    %108 = vmatprep.subr.mxu0 0.0
    %109 = vmatpush1.msra.mxu0 0.0
    %110 = vmatprep.subr.mxu0 0.0
    %111 = vmatpush1.msra.mxu0 0.0
    %112 = vmatprep.subr.mxu0 0.0
    %113 = vmatpush1.msra.mxu0 0.0
    %114 = vmatprep.subr.mxu0 0.0
    %115 = vmatpush1.msra.mxu0 0.0
    %116 = vmatprep.subr.mxu0 0.0
    %117 = vmatpush1.msra.mxu0 0.0
    %118 = vmatprep.subr.mxu0 0.0
    %119 = vmatpush1.msra.mxu0 0.0
    %120 = vmatprep.subr.mxu0 0.0
    %121 = vmatpush1.msra.mxu0 0.0
    %122 = vmatprep.subr.mxu0 0.0
    %123 = vmatpush1.msra.mxu0 0.0
    %124 = vmatprep.subr.mxu0 0.0
    %125 = vmatpush1.msra.mxu0 0.0
    %126 = vmatprep.subr.mxu0 0.0
    %127 = vmatpush1.msra.mxu0 0.0
    %128 = vmatprep.subr.mxu0 0.0
    %129 = vmatpush1.msra.mxu0 0.0
    %130 = vmatprep.subr.mxu0 0.0
    %131 = vmatpush1.msra.mxu0 0.0
    %132 = vmatprep.subr.mxu0 0.0
    %133 = vmatpush1.msra.mxu0 0.0
    %134 = vmatprep.subr.mxu0 0.0
    %135 = vmatpush1.msra.mxu0 0.0
    %136 = vmatprep.subr.mxu0 0.0
    %137 = vmatpush1.msra.mxu0 0.0
    %138 = vmatprep.mubr.f32.mxu0 0.0
    %139 = vmatmul.mubr.f32.gmra.mrb[0].mxu0 %v49
    %v140 = vpop.f32.mrb[0].mxu0
    %v141 = vadd.f32 %v72, %v140
    %v142 = vpop.f32.mrb[0].mxu0
    %143 = vmatprep.mubr.f32.mxu0 0.0
    %144 = vmatmul.mubr.f32.gmra.mrb[0].mxu0 %v50
    %v145 = vpop.f32.mrb[0].mxu0
    %v146 = vadd.f32 %v72, %v145
    %v147 = vpop.f32.mrb[0].mxu0
    %148 = vdwg.mxu0
    %v149 = vadd.f32 %v49, %v141
    %v150 = vadd.f32 %v50, %v146
    %151 = vadd.xlane.f32.xlu0 %v149
    %v152 = vpop.xlane.xlu0 %151
    %153 = vadd.xlane.f32.xlu0 %v150
    %v154 = vpop.xlane.xlu0 %153
    %v155 = vmul.f32 %v149, %v149
    %v156 = vmul.f32 %v150, %v150
    %157 = vadd.xlane.f32.xlu0 %v155
    %v158 = vpop.xlane.xlu0 %157
    %159 = vadd.xlane.f32.xlu0 %v156
    %v160 = vpop.xlane.xlu0 %159
    %v161 = vmul.f32 %v152, 0.0078125
    %v162 = vmul.f32 %v154, 0.0078125
    %v163 = vmul.f32 %v158, 0.0078125
    %v164 = vmul.f32 %v160, 0.0078125
    %v165 = vmul.f32 %v161, %v161
    %v166 = vmul.f32 %v162, %v162
    %v167 = vsub.f32 %v163, %v165
    %v168 = vsub.f32 %v164, %v166
    %v169 = vadd.f32 %v167, 1e-05
    %v170 = vadd.f32 %v168, 1e-05
    %v171 = vrsqrt.pop %v169
    %v172 = vrsqrt.pop %v170
    %v173 = vsub.f32 %v149, %v161
    %v174 = vsub.f32 %v150, %v162
    %v175 = vmul.f32 %v173, %v171
    %v176 = vmul.f32 %v174, %v172
    %v177 = vld [vmem:[%s3] sm:$0x1]
    %v179 = vlaneseq
    %v180 = vshrl.u32 %v179, 7
    %v181 = vsub.s32 0, %v180
    %v182 = vrot.slane %v177, %v181
    %v184 = vmul.f32 %v175, %v182
    %v185 = vmul.f32 %v176, %v182
    %v186 = vld [vmem:[%s4] sm:$0x1]
    %v188 = vlaneseq
    %v189 = vshrl.u32 %v188, 7
    %v190 = vsub.s32 0, %v189
    %v191 = vrot.slane %v186, %v190
    %v193 = vadd.f32 %v184, %v191
    %v194 = vadd.f32 %v185, %v191
    %195 = vst [vmem:[#allocation7] sm:$0xff] %v193
    %196 = vst [vmem:[#allocation7 + $0x8] sm:$0xff] %v194
    // Predicated region
    $region30: #{residual_forward.1} parent=1 // pred_check
      _
    $region31: #{residual_forward.1} parent=1 // pred_check_branch
      %198 = sbr.rel (0) target = $region33
    $region32: #{residual_forward.1} parent=1 // pred_region
      %s200 = ssub.s32 256, 256
      %201 = vsyncadd [#allocation4], %s200
      %s202 = sshll.u32 [#allocation7], 4
      %s203 = int_to_ptr.vmem [resolvable:$true] %s202
      %208 = dma.vmem_to_hbm [thread:$0]  %s203, 256, %s5, [#allocation4], 128, 128, 8
    $region33: #{residual_forward.1} parent=1 // pred_fallthru
      _
    // Predicated region
    $region34: #{residual_forward.1} parent=1 // pred_check
      _
    $region35: #{residual_forward.1} parent=1 // pred_check_branch
      %210 = sbr.rel (0) target = $region37
    $region36: #{residual_forward.1} parent=1 // pred_region
      %211 = dma.done [#allocation4], 256
    $region37: #{residual_forward.1} parent=1 // pred_fallthru
      _
    %212 = vsyncpa [#allocation3], 1
    %213 = vsyncpa [#allocation6], 1
    %214 = vsyncpa [#allocation4], 1

</llo_original>
